<compile_context>
chip_gen: v7x
topology: tpu7x:2x2x1
jax: 0.10.0
libtpu: 0.0.40
codegen_flags: <defaults>
</compile_context>

<pallas_src>
import math

import jax
import jax.numpy as jnp
from jax.experimental import pallas as pl
from jax.experimental.pallas import tpu as pltpu

_MIB = 1024 * 1024


def _round_up(a: int, b: int) -> int:
    return (a + b - 1) // b * b


def _chip_config():
    """Per-generation tile defaults + physical VMEM capacity."""
    vmem_cap = 64 * _MIB  # conservative fallback (v7x per-TC)
    try:
        info = pltpu.get_tpu_info()
        vmem_cap = int(getattr(info, "vmem_capacity_bytes", vmem_cap))
    except Exception:
        pass
    kind = ""
    try:
        kind = jax.devices()[0].device_kind.lower()
    except Exception:
        pass
    if vmem_cap <= 80 * _MIB:
        # v7x-class: 64 MiB per TensorCore.
        return dict(row_tile=512, vocab_tile=1024, vmem_cap=vmem_cap)
    if "v5" in kind:
        # v5e-class: 128 MiB VMEM, 4x128^2 MXU -> 512-row tiles.
        return dict(row_tile=512, vocab_tile=2048, vmem_cap=vmem_cap)
    # v6e-class: 128 MiB VMEM, ridge ~655 flops/B -> go tall on rows.
    return dict(row_tile=1024, vocab_tile=2048, vmem_cap=vmem_cap)


def _pick_vocab_tile(V, vocab_tile):
    """Prefer a vocab tile that divides V exactly (Vp == V -> no padding)."""
    vocab_tile = max(128, vocab_tile - vocab_tile % 128)
    if V % 128 == 0:
        for tv in range(min(vocab_tile, V), 127, -128):
            if V % tv == 0:
                if tv >= min(vocab_tile, 512) or tv == V:
                    return tv, V
                break
    tv = min(vocab_tile, _round_up(V, 128))
    return tv, _round_up(V, tv)


def _pass1_vmem_bytes(tm, tv, H, itm):
    """Working-set estimate; double-buffer factor ALREADY included (no extra 2x)."""
    return (2 * tm * H * itm      # x row tile (double buffered)
            + 2 * H * tv * itm    # streamed W vocab tile (double buffered)
            + 2 * tv * 4          # bias tile (f32)
            + 2 * tm * tv * 4     # logits output tile (f32)
            + 2 * tm * 4          # lse output
            + 2 * tm * 4)         # m / l scratch


def _logits_lse_kernel(x_ref, w_ref, b_ref, logits_ref, lse_ref, m_sc, l_sc):
    """Grid (i=row tile, j=vocab tile).  Emits logits tiles + per-row lse."""
    j = pl.program_id(1)

    @pl.when(j == 0)
    def _():
        m_sc[...] = jnp.full_like(m_sc, -jnp.inf)
        l_sc[...] = jnp.zeros_like(l_sc)

    # MXU matmul in the feed dtype (bf16 default), f32 accumulation.
    logits = jnp.dot(x_ref[...], w_ref[...], preferred_element_type=jnp.float32)
    logits = logits + b_ref[...]            # bias f32, broadcast (1, TV)
    logits_ref[...] = logits                # stream logits tile to HBM

    # Online logsumexp over the vocab axis (XLU max/sum, EUP exp).
    m_prev = m_sc[...]                                         # (TM, 1)
    m_new = jnp.maximum(m_prev, jnp.max(logits, axis=-1, keepdims=True))
    l_sc[...] = l_sc[...] * jnp.exp(m_prev - m_new) + jnp.sum(
        jnp.exp(logits - m_new), axis=-1, keepdims=True)
    m_sc[...] = m_new

    @pl.when(j == pl.num_programs(1) - 1)
    def _():
        lse_ref[...] = m_sc[...] + jnp.log(l_sc[...])


def _finalize_kernel(logits_ref, lse_ref, o_ref):
    """log_softmax finalize: out = logits - lse (in place via aliasing)."""
    o_ref[...] = (logits_ref[...] - lse_ref[...]).astype(o_ref.dtype)


def prepare_generator_weight(weight, compute_dtype=jnp.bfloat16):
    """Hoist the per-call weight cast: store W pre-cast to the MXU feed dtype."""
    return weight.astype(compute_dtype)


def generator_forward(x, weight, bias, *, log_softmax=True,
                      row_tile=None, vocab_tile=None,
                      compute_dtype=jnp.bfloat16):
    """x: (..., H); weight: (H, V); bias: (V,).  Returns (..., V) float32."""
    orig_lead = x.shape[:-1]
    H = x.shape[-1]
    V = weight.shape[1]

    cfg = _chip_config()
    vmem_cap = cfg["vmem_cap"]
    budget = vmem_cap - 8 * _MIB          # physical cap minus headroom
    if row_tile is None:
        row_tile = cfg["row_tile"]
    if vocab_tile is None:
        vocab_tile = cfg["vocab_tile"]

    x2 = jnp.reshape(x, (-1, H))
    N = x2.shape[0]
    itm = jnp.dtype(compute_dtype).itemsize

    # --- tile sizes (sublane/lane aligned), shrunk until they fit VMEM -------
    tm = min(row_tile, _round_up(max(N, 1), 8))          # rows: multiple of 8
    tv, Vp = _pick_vocab_tile(V, vocab_tile)
    while _pass1_vmem_bytes(tm, tv, H, itm) > budget and (tv > 512 or tm > 256):
        if tv > 512:
            tv, Vp = _pick_vocab_tile(V, tv // 2)
        else:
            tm = max(_round_up(tm // 2, 8), 8)
    Np = _round_up(N, tm)
    nrow = Np // tm
    nvoc = Vp // tv
    # Pad-bias (-1e30) trick is only safe because a vocab tile can never be
    # entirely padding.
    assert Vp - V < tv, "vocab padding must be strictly less than one tile"

    # --- padding (sliced off at the end; Vp == V in the common case) ---------
    if Np != N:
        x2 = jnp.pad(x2, ((0, Np - N), (0, 0)))
    w = weight
    b = bias.astype(jnp.float32)
    if Vp != V:
        w = jnp.pad(w, ((0, 0), (0, Vp - V)))
        b = jnp.pad(b, ((0, Vp - V),), constant_values=-1e30)
    b2 = jnp.reshape(b, (1, Vp))

    # Feed the MXU in compute_dtype; accumulate in f32.  Cast is skipped when
    # the weight was prepared via prepare_generator_weight().
    x2 = x2.astype(compute_dtype)
    if w.dtype != compute_dtype:
        w = w.astype(compute_dtype)

    est1 = _pass1_vmem_bytes(tm, tv, H, itm)
    vmem_limit1 = int(min(max(est1 + 2 * _MIB, 16 * _MIB), budget))

    logits, lse = pl.pallas_call(
        _logits_lse_kernel,
        out_shape=(jax.ShapeDtypeStruct((Np, Vp), jnp.float32),
                   jax.ShapeDtypeStruct((Np, 1), jnp.float32)),
        grid_spec=pltpu.PrefetchScalarGridSpec(
            num_scalar_prefetch=0,
            grid=(nrow, nvoc),                       # rows outer, vocab inner
            in_specs=[
                pl.BlockSpec((tm, H), lambda i, j: (i, 0)),   # x row tile
                pl.BlockSpec((H, tv), lambda i, j: (0, j)),   # streamed W V-tile
                pl.BlockSpec((1, tv), lambda i, j: (0, j)),   # bias V-tile (f32)
            ],
            out_specs=[
                pl.BlockSpec((tm, tv), lambda i, j: (i, j)),  # logits tile
                pl.BlockSpec((tm, 1), lambda i, j: (i, 0)),   # lse (resident over j)
            ],
            scratch_shapes=[pltpu.VMEM((tm, 1), jnp.float32),   # running max
                            pltpu.VMEM((tm, 1), jnp.float32)],  # running sum
        ),
        compiler_params=pltpu.CompilerParams(
            dimension_semantics=("parallel", "arbitrary"),
            vmem_limit_bytes=vmem_limit1,
        ),
    )(x2, w, b2)

    if log_softmax:
        # Pass 2 is pure HBM traffic: widen the vocab block as far as the VMEM
        # budget allows (lane-dense, fewer grid steps).  Widths are multiples
        # of tv that divide Vp exactly.
        tv2 = tv
        for d in range(nvoc, 0, -1):
            if nvoc % d:
                continue
            cand = tv * d
            if 16 * tm * cand + 8 * tm + 2 * _MIB <= budget:
                tv2 = cand
                break
        est2 = 16 * tm * tv2 + 8 * tm
        vmem_limit2 = int(min(max(est2 + 2 * _MIB, 16 * _MIB), budget))

        out = pl.pallas_call(
            _finalize_kernel,
            out_shape=jax.ShapeDtypeStruct((Np, Vp), jnp.float32),
            grid_spec=pltpu.PrefetchScalarGridSpec(
                num_scalar_prefetch=0,
                grid=(nrow, Vp // tv2),
                in_specs=[
                    pl.BlockSpec((tm, tv2), lambda i, j: (i, j)),
                    pl.BlockSpec((tm, 1), lambda i, j: (i, 0)),
                ],
                out_specs=pl.BlockSpec((tm, tv2), lambda i, j: (i, j)),
            ),
            compiler_params=pltpu.CompilerParams(
                dimension_semantics=("parallel", "parallel"),
                vmem_limit_bytes=vmem_limit2,
            ),
            input_output_aliases={0: 0},     # rewrite logits buffer in place
        )(logits, lse)
    else:
        out = logits

    if Np != N or Vp != V:
        out = out[:N, :V]
    return jnp.reshape(out, orig_lead + (V,))


def init_generator_params(key, hidden_size, output_size, dtype=jnp.float32):
    # Matches the PyTorch init: uniform(-stdv, stdv) for weight, zeros for bias.
    stdv = 1.0 / math.sqrt(hidden_size)
    # Stored as (H, V) so the kernel does x @ W directly (PyTorch stores (V, H)).
    w = jax.random.uniform(
        key, (hidden_size, output_size), dtype=dtype, minval=-stdv, maxval=stdv
    )
    b = jnp.zeros((output_size,), dtype=dtype)
    return w, b


if __name__ == "__main__":
    fwd = jax.jit(
        generator_forward,
        static_argnames=("log_softmax", "row_tile", "vocab_tile", "compute_dtype"),
    )

    # ---- case 1: aligned shapes ----
    batch, seq, hidden, vocab = 2, 8, 32, 128
    key = jax.random.PRNGKey(0)
    k_x, k_w, k_x2, k_w2 = jax.random.split(key, 4)

    x = jax.random.normal(k_x, (batch, seq, hidden), dtype=jnp.float32)
    weight, bias = init_generator_params(k_w, hidden, vocab)

    ref_logits = (x.reshape(-1, hidden) @ weight + bias).astype(jnp.float32)
    ref = jax.nn.log_softmax(ref_logits, axis=-1).reshape(batch, seq, vocab)

    # f32 compute path: must match the reference tightly.
    out_f32 = jax.block_until_ready(
        fwd(x, weight, bias, log_softmax=True, compute_dtype=jnp.float32))
    assert out_f32.shape == (batch, seq, vocab)
    assert out_f32.dtype == jnp.float32
    assert jnp.allclose(out_f32, ref, atol=1e-5, rtol=1e-5)

    # default fast path (bf16 MXU feed, f32 accumulation): loose tolerance.
    out_bf = jax.block_until_ready(fwd(x, weight, bias, log_softmax=True))
    assert out_bf.dtype == jnp.float32
    assert jnp.allclose(out_bf, ref, atol=5e-2, rtol=5e-2)

    # pre-cast (hoisted) weight path: same fast path, weight already bf16.
    w_bf16 = prepare_generator_weight(weight, jnp.bfloat16)
    out_pc = jax.block_until_ready(fwd(x, w_bf16, bias, log_softmax=True))
    assert jnp.allclose(out_pc, ref, atol=5e-2, rtol=5e-2)

    # logits-only path (log_softmax=False).
    out_lin = jax.block_until_ready(
        fwd(x, weight, bias, log_softmax=False, compute_dtype=jnp.float32))
    assert jnp.allclose(out_lin, ref_logits.reshape(batch, seq, vocab),
                        atol=1e-5, rtol=1e-5)

    # ---- case 2: ragged shapes (exercise row + vocab padding) ----
    b2_, s2_, v2_ = 3, 5, 100
    x2_ = jax.random.normal(k_x2, (b2_, s2_, hidden), dtype=jnp.float32)
    w2_, bias2_ = init_generator_params(k_w2, hidden, v2_)
    ref2 = jax.nn.log_softmax(
        (x2_.reshape(-1, hidden) @ w2_ + bias2_).astype(jnp.float32), axis=-1
    ).reshape(b2_, s2_, v2_)
    out2 = jax.block_until_ready(
        fwd(x2_, w2_, bias2_, log_softmax=True, compute_dtype=jnp.float32))
    assert out2.shape == (b2_, s2_, v2_)
    assert jnp.allclose(out2, ref2, atol=1e-5, rtol=1e-5)

    print("KERNEL_OK")
</pallas_src>

<mosaic_0001>
module attributes {stable_mosaic.version = 11 : i64} {
  func.func @_finalize_kernel(%arg0: i32, %arg1: i32, %arg2: memref<16x128xf32, #tpu.memory_space<vmem>>, %arg3: memref<16x1xf32, #tpu.memory_space<vmem>>, %arg4: memref<16x128xf32, #tpu.memory_space<vmem>>) attributes {dimension_semantics = [#tpu.dimension_semantics<parallel>, #tpu.dimension_semantics<parallel>], iteration_bounds = array<i64: 1, 1>, scalar_prefetch = 0 : i64, scratch_operands = 0 : i64, tpu.core_type = #tpu.core_type<tc>, window_params = [{transform_indices = @transform_0, window_bounds = array<i64: 16, 128>}, {transform_indices = @transform_1, window_bounds = array<i64: 16, 1>}, {transform_indices = @transform_2, window_bounds = array<i64: 16, 128>}]} {
    %c0 = arith.constant 0 : index
    %c0_0 = arith.constant 0 : index
    %0 = vector.load %arg2[%c0, %c0_0] : memref<16x128xf32, #tpu.memory_space<vmem>>, vector<16x128xf32>
    %c0_1 = arith.constant 0 : index
    %c0_2 = arith.constant 0 : index
    %1 = vector.load %arg3[%c0_1, %c0_2] : memref<16x1xf32, #tpu.memory_space<vmem>>, vector<16x1xf32>
    %2 = vector.broadcast %1 : vector<16x1xf32> to vector<16x128xf32>
    %3 = arith.subf %0, %2 : vector<16x128xf32>
    %c0_3 = arith.constant 0 : index
    %c0_4 = arith.constant 0 : index
    %4 = vector.load %arg4[%c0_3, %c0_4] : memref<16x128xf32, #tpu.memory_space<vmem>>, vector<16x128xf32>
    tpu.vector_store %arg4[%c0_3, %c0_4], %3 {strides = array<i32>} : memref<16x128xf32, #tpu.memory_space<vmem>>, vector<16x128xf32>,
    return
  }
  func.func @transform_0(%arg0: i32, %arg1: i32) -> (i32, i32) {
    %c0_i32 = arith.constant 0 : i32
    return %arg0, %arg1 : i32, i32
  }
  func.func @transform_1(%arg0: i32, %arg1: i32) -> (i32, i32) {
    %c0_i32 = arith.constant 0 : i32
    %c0_i32_0 = arith.constant 0 : i32
    return %arg0, %c0_i32 : i32, i32
  }
  func.func @transform_2(%arg0: i32, %arg1: i32) -> (i32, i32) {
    %c0_i32 = arith.constant 0 : i32
    return %arg0, %arg1 : i32, i32
  }
}

module attributes {stable_mosaic.version = 11 : i64} {
  func.func @_logits_lse_kernel(%arg0: i32, %arg1: i32, %arg2: memref<16x32xf32, #tpu.memory_space<vmem>>, %arg3: memref<32x128xf32, #tpu.memory_space<vmem>>, %arg4: memref<1x128xf32, #tpu.memory_space<vmem>>, %arg5: memref<16x128xf32, #tpu.memory_space<vmem>>, %arg6: memref<16x1xf32, #tpu.memory_space<vmem>>, %arg7: memref<16x1xf32, #tpu.memory_space<vmem>>, %arg8: memref<16x1xf32, #tpu.memory_space<vmem>>) attributes {dimension_semantics = [#tpu.dimension_semantics<parallel>, #tpu.dimension_semantics<arbitrary>], iteration_bounds = array<i64: 1, 1>, scalar_prefetch = 0 : i64, scratch_operands = 2 : i64, tpu.core_type = #tpu.core_type<tc>, window_params = [{transform_indices = @transform_0, window_bounds = array<i64: 16, 32>}, {transform_indices = @transform_1, window_bounds = array<i64: 32, 128>}, {transform_indices = @transform_2, window_bounds = array<i64: 1, 128>}, {transform_indices = @transform_3, window_bounds = array<i64: 16, 128>}, {transform_indices = @transform_4, window_bounds = array<i64: 16, 1>}]} {
    %c0_i32 = arith.constant 0 : i32
    %0 = arith.cmpi eq, %arg1, %c0_i32 : i32
    %1 = arith.extui %0 : i1 to i32
    %c0_i32_0 = arith.constant 0 : i32
    %2 = arith.cmpi ne, %1, %c0_i32_0 : i32
    scf.if %2 {
      %cst_20 = arith.constant 0xFF800000 : f32
      %29 = vector.broadcast %cst_20 : f32 to vector<16x1xf32>
      %c0_21 = arith.constant 0 : index
      %c0_22 = arith.constant 0 : index
      %30 = vector.load %arg7[%c0_21, %c0_22] : memref<16x1xf32, #tpu.memory_space<vmem>>, vector<16x1xf32>
      tpu.vector_store %arg7[%c0_21, %c0_22], %29 {strides = array<i32>} : memref<16x1xf32, #tpu.memory_space<vmem>>, vector<16x1xf32>,
      %cst_23 = arith.constant 0.000000e+00 : f32
      %31 = vector.broadcast %cst_23 : f32 to vector<16x1xf32>
      %c0_24 = arith.constant 0 : index
      %c0_25 = arith.constant 0 : index
      %32 = vector.load %arg8[%c0_24, %c0_25] : memref<16x1xf32, #tpu.memory_space<vmem>>, vector<16x1xf32>
      tpu.vector_store %arg8[%c0_24, %c0_25], %31 {strides = array<i32>} : memref<16x1xf32, #tpu.memory_space<vmem>>, vector<16x1xf32>,
    } else {
    }
    %c0 = arith.constant 0 : index
    %c0_1 = arith.constant 0 : index
    %3 = vector.load %arg2[%c0, %c0_1] : memref<16x32xf32, #tpu.memory_space<vmem>>, vector<16x32xf32>
    %c0_2 = arith.constant 0 : index
    %c0_3 = arith.constant 0 : index
    %4 = vector.load %arg3[%c0_2, %c0_3] : memref<32x128xf32, #tpu.memory_space<vmem>>, vector<32x128xf32>
    %cst = arith.constant dense<0.000000e+00> : vector<16x128xf32>
    %5 = tpu.matmul %3, %4, %cst {dimension_numbers = #tpu.dot_dimension_numbers<[1], [0], [0], [1], [0, 0, 1, 1], [], []>} : vector<16x32xf32>, vector<32x128xf32>, vector<16x128xf32> -> vector<16x128xf32>
    %c0_4 = arith.constant 0 : index
    %c0_5 = arith.constant 0 : index
    %6 = vector.load %arg4[%c0_4, %c0_5] : memref<1x128xf32, #tpu.memory_space<vmem>>, vector<1x128xf32>
    %7 = vector.broadcast %6 : vector<1x128xf32> to vector<16x128xf32>
    %8 = arith.addf %5, %7 : vector<16x128xf32>
    %c0_6 = arith.constant 0 : index
    %c0_7 = arith.constant 0 : index
    %9 = vector.load %arg5[%c0_6, %c0_7] : memref<16x128xf32, #tpu.memory_space<vmem>>, vector<16x128xf32>
    tpu.vector_store %arg5[%c0_6, %c0_7], %8 {strides = array<i32>} : memref<16x128xf32, #tpu.memory_space<vmem>>, vector<16x128xf32>,
    %c0_8 = arith.constant 0 : index
    %c0_9 = arith.constant 0 : index
    %10 = vector.load %arg7[%c0_8, %c0_9] : memref<16x1xf32, #tpu.memory_space<vmem>>, vector<16x1xf32>
    %cst_10 = arith.constant dense<0xFF800000> : vector<16xf32>
    %11 = vector.multi_reduction <maximumf>, %8, %cst_10 [1] : vector<16x128xf32> to vector<16xf32>
    %12 = vector.shape_cast %11 : vector<16xf32> to vector<16x1xf32>
    %13 = arith.maximumf %10, %12 : vector<16x1xf32>
    %c0_11 = arith.constant 0 : index
    %c0_12 = arith.constant 0 : index
    %14 = vector.load %arg8[%c0_11, %c0_12] : memref<16x1xf32, #tpu.memory_space<vmem>>, vector<16x1xf32>
    %15 = arith.subf %10, %13 : vector<16x1xf32>
    %16 = math.exp %15 : vector<16x1xf32>
    %17 = arith.mulf %14, %16 : vector<16x1xf32>
    %18 = vector.broadcast %13 : vector<16x1xf32> to vector<16x128xf32>
    %19 = arith.subf %8, %18 : vector<16x128xf32>
    %20 = math.exp %19 : vector<16x128xf32>
    %cst_13 = arith.constant dense<0.000000e+00> : vector<16xf32>
    %21 = vector.multi_reduction <add>, %20, %cst_13 [1] : vector<16x128xf32> to vector<16xf32>
    %22 = vector.shape_cast %21 : vector<16xf32> to vector<16x1xf32>
    %23 = arith.addf %17, %22 : vector<16x1xf32>
    %c0_14 = arith.constant 0 : index
    %c0_15 = arith.constant 0 : index
    %24 = vector.load %arg8[%c0_14, %c0_15] : memref<16x1xf32, #tpu.memory_space<vmem>>, vector<16x1xf32>
    tpu.vector_store %arg8[%c0_14, %c0_15], %23 {strides = array<i32>} : memref<16x1xf32, #tpu.memory_space<vmem>>, vector<16x1xf32>,
    %c0_16 = arith.constant 0 : index
    %c0_17 = arith.constant 0 : index
    %25 = vector.load %arg7[%c0_16, %c0_17] : memref<16x1xf32, #tpu.memory_space<vmem>>, vector<16x1xf32>
    tpu.vector_store %arg7[%c0_16, %c0_17], %13 {strides = array<i32>} : memref<16x1xf32, #tpu.memory_space<vmem>>, vector<16x1xf32>,
    %c0_i32_18 = arith.constant 0 : i32
    %26 = arith.cmpi eq, %arg1, %c0_i32_18 : i32
    %27 = arith.extui %26 : i1 to i32
    %c0_i32_19 = arith.constant 0 : i32
    %28 = arith.cmpi ne, %27, %c0_i32_19 : i32
    scf.if %28 {
      %c0_20 = arith.constant 0 : index
      %c0_21 = arith.constant 0 : index
      %29 = vector.load %arg7[%c0_20, %c0_21] : memref<16x1xf32, #tpu.memory_space<vmem>>, vector<16x1xf32>
      %c0_22 = arith.constant 0 : index
      %c0_23 = arith.constant 0 : index
      %30 = vector.load %arg8[%c0_22, %c0_23] : memref<16x1xf32, #tpu.memory_space<vmem>>, vector<16x1xf32>
      %31 = math.log %30 : vector<16x1xf32>
      %32 = arith.addf %29, %31 : vector<16x1xf32>
      %c0_24 = arith.constant 0 : index
      %c0_25 = arith.constant 0 : index
      %33 = vector.load %arg6[%c0_24, %c0_25] : memref<16x1xf32, #tpu.memory_space<vmem>>, vector<16x1xf32>
      tpu.vector_store %arg6[%c0_24, %c0_25], %32 {strides = array<i32>} : memref<16x1xf32, #tpu.memory_space<vmem>>, vector<16x1xf32>,
    } else {
    }
    return
  }
  func.func @transform_0(%arg0: i32, %arg1: i32) -> (i32, i32) {
    %c0_i32 = arith.constant 0 : i32
    %c0_i32_0 = arith.constant 0 : i32
    return %arg0, %c0_i32 : i32, i32
  }
  func.func @transform_1(%arg0: i32, %arg1: i32) -> (i32, i32) {
    %c0_i32 = arith.constant 0 : i32
    %c0_i32_0 = arith.constant 0 : i32
    return %c0_i32, %arg1 : i32, i32
  }
  func.func @transform_2(%arg0: i32, %arg1: i32) -> (i32, i32) {
    %c0_i32 = arith.constant 0 : i32
    %c0_i32_0 = arith.constant 0 : i32
    return %c0_i32, %arg1 : i32, i32
  }
  func.func @transform_3(%arg0: i32, %arg1: i32) -> (i32, i32) {
    %c0_i32 = arith.constant 0 : i32
    return %arg0, %arg1 : i32, i32
  }
  func.func @transform_4(%arg0: i32, %arg1: i32) -> (i32, i32) {
    %c0_i32 = arith.constant 0 : i32
    %c0_i32_0 = arith.constant 0 : i32
    return %arg0, %c0_i32 : i32, i32
  }
}

</mosaic_0001>

<llo_original>
// kernel: generator_forward.3
$region0: #{generator_forward.3}
  #allocation0 [shape = 'u32[]', space=smem, size = 0x4, offset = 0x4, fixed_abs, tag = 'smem constant byte address 0x4 - core index']
  #allocation1 [shape = 'u32[144,128]{1,0:T(1,128)}', space=vmem, size = 0x12000, scoped, tag = 'internal scratch']
  %s0 = inlined_call_operand.vmem [shape: f32[16,128], index: 0, kind: input, shape index: {}, may-alias: {0,2}]
  %s1 = inlined_call_operand.vmem [shape: f32[16,1], index: 1, kind: input, shape index: {}]
  %s2 = inlined_call_operand.vmem [shape: f32[16,128], index: 2, kind: output, shape index: {}, may-alias: {0,2}]
  %s3 = sld [smem:[#allocation0]]
  $region18: #{generator_forward.3} parent=0
    _
  %s5 = ssub.s32 1, %s3
  %s6 = scalar_select 0, %s5, %s3
  // Predicated region
  $region2: #{generator_forward.3} parent=0 // pred_check
    _
  $region3: #{generator_forward.3} parent=0 // pred_check_branch
    %8 = sbr.rel (0) target = $region5
  $region4: #{generator_forward.3} parent=0 // pred_region
    _
  $region5: #{generator_forward.3} parent=0 // pred_fallthru
    _
  // Predicated region
  $region6: #{generator_forward.3} parent=0 // pred_check
    _
  $region7: #{generator_forward.3} parent=0 // pred_check_branch
    %10 = sbr.rel (0) target = $region9
  $region8: #{generator_forward.3} parent=0 // pred_region
    _
  $region9: #{generator_forward.3} parent=0 // pred_fallthru
    _
  %v11 = vld [vmem:[%s0] sm:$0xff]
  %v12 = vld [vmem:[%s0 + $0x8] sm:$0xff]
  %v13 = vld [vmem:[%s1] sm:$0xff]
  %v14 = vld [vmem:[%s1 + $0x8] sm:$0xff]
  %16 = vset.pattern.permute.xlu0 0
  %17 = vperm.xlu0 %16, %v13
  %v18 = vpop.permute.xlu0 %17
  %21 = vset.pattern.permute.xlu0 0
  %22 = vperm.xlu0 %21, %v14
  %v23 = vpop.permute.xlu0 %22
  %v25 = vsub.f32 %v11, %v18
  %v26 = vsub.f32 %v12, %v23
  %27 = vst [vmem:[%s2] sm:$0xff] %v25
  %28 = vst [vmem:[%s2 + $0x8] sm:$0xff] %v26
  // Predicated region
  $region10: #{generator_forward.3} parent=0 // pred_check
    _
  $region11: #{generator_forward.3} parent=0 // pred_check_branch
    %30 = sbr.rel (0) target = $region13
  $region12: #{generator_forward.3} parent=0 // pred_region
    _
  $region13: #{generator_forward.3} parent=0 // pred_fallthru
    _
  // Predicated region
  $region14: #{generator_forward.3} parent=0 // pred_check
    _
  $region15: #{generator_forward.3} parent=0 // pred_check_branch
    %32 = sbr.rel (0) target = $region17
  $region16: #{generator_forward.3} parent=0 // pred_region
    _
  $region17: #{generator_forward.3} parent=0 // pred_fallthru
    _

// kernel: generator_forward.2
$region0: #{generator_forward.2}
  #allocation0 [shape = 'u32[]', space=smem, size = 0x4, offset = 0x4, fixed_abs, tag = 'smem constant byte address 0x4 - core index']
  #allocation1 [shape = 'u32[144,128]{1,0:T(1,128)}', space=vmem, size = 0x12000, scoped, tag = 'internal scratch']
  #allocation2 [shape = 'f32[16,1]{1,0:T(8,128)}', space=vmem, size = 0x2000, scoped, tag = 'scratch operand']
  #allocation3 [shape = 'f32[16,1]{1,0:T(8,128)}', space=vmem, size = 0x2000, scoped, tag = 'scratch operand']
  %s0 = inlined_call_operand.hbm [shape: f32[16,32], index: 0, kind: input, shape index: {}]
  %s1 = inlined_call_operand.hbm [shape: f32[32,128], index: 1, kind: input, shape index: {}]
  %s2 = inlined_call_operand.vmem [shape: f32[1,128], index: 2, kind: input, shape index: {}]
  %s3 = inlined_call_operand.vmem [shape: f32[16,128], index: 3, kind: output, shape index: {0}]
  %s4 = inlined_call_operand.vmem [shape: f32[16,1], index: 4, kind: output, shape index: {1}]
  %5 = xla_tuple %s3, %s4
  %s6 = sld [smem:[#allocation0]]
  $region46: #{generator_forward.2} parent=0
    _
  %s8 = ssub.s32 1, %s6
  %s9 = scalar_select 0, %s8, %s6
  $region1: #{generator_forward.2} parent=0
    #allocation4 [shape = 'u8[8192]{0}', space=vmem, size = 0x2000, scoped, tag = 'input window, operand 0, single buffered']
    #allocation5 [shape = 's32[1]{0}', space=sflag, size = 0x4, scoped, tag = 'scoped memory for generator_forward.2']
    #allocation6 [shape = 'u8[16384]{0}', space=vmem, size = 0x4000, scoped, tag = 'input window, operand 1, single buffered']
    #allocation7 [shape = 's32[1]{0}', space=sflag, size = 0x4, scoped, tag = 'scoped memory for generator_forward.2']
    %10 = vsyncpa [#allocation5], 0
    %11 = vsyncpa [#allocation7], 0
    // Predicated region
    $region2: #{generator_forward.2} parent=1 // pred_check
      _
    $region3: #{generator_forward.2} parent=1 // pred_check_branch
      %13 = sbr.rel (0) target = $region5
    $region4: #{generator_forward.2} parent=1 // pred_region
      %s15 = ssub.s32 256, 256
      %16 = vsyncadd [#allocation5], %s15
      %s17 = sshll.u32 [#allocation4], 4
      %s18 = int_to_ptr.vmem [resolvable:$true] %s17
      %23 = dma.hbm_to_vmem [thread:$0]  %s0, 256, %s18, [#allocation5], 128, 128, 8
    $region5: #{generator_forward.2} parent=1 // pred_fallthru
      _
    // Predicated region
    $region6: #{generator_forward.2} parent=1 // pred_check
      _
    $region7: #{generator_forward.2} parent=1 // pred_check_branch
      %25 = sbr.rel (0) target = $region9
    $region8: #{generator_forward.2} parent=1 // pred_region
      %s27 = ssub.s32 512, 512
      %28 = vsyncadd [#allocation7], %s27
      %s29 = sshll.u32 [#allocation6], 4
      %s30 = int_to_ptr.vmem [resolvable:$true] %s29
      %35 = dma.hbm_to_vmem [thread:$0]  %s1, 512, %s30, [#allocation7], 128, 128, 8
    $region9: #{generator_forward.2} parent=1 // pred_fallthru
      _
    // Predicated region
    $region10: #{generator_forward.2} parent=1 // pred_check
      _
    $region11: #{generator_forward.2} parent=1 // pred_check_branch
      %37 = sbr.rel (0) target = $region13
    $region12: #{generator_forward.2} parent=1 // pred_region
      _
    $region13: #{generator_forward.2} parent=1 // pred_fallthru
      _
    // Predicated region
    $region14: #{generator_forward.2} parent=1 // pred_check
      _
    $region15: #{generator_forward.2} parent=1 // pred_check_branch
      %39 = sbr.rel (0) target = $region17
    $region16: #{generator_forward.2} parent=1 // pred_region
      %40 = dma.done [#allocation5], 256
    $region17: #{generator_forward.2} parent=1 // pred_fallthru
      _
    // Predicated region
    $region18: #{generator_forward.2} parent=1 // pred_check
      _
    $region19: #{generator_forward.2} parent=1 // pred_check_branch
      %42 = sbr.rel (0) target = $region21
    $region20: #{generator_forward.2} parent=1 // pred_region
      %43 = dma.done [#allocation7], 512
    $region21: #{generator_forward.2} parent=1 // pred_fallthru
      _
    %p44 = scmp.eq.s32.totalorder 0, 0
    // Predicated region
    $region22: #{generator_forward.2} parent=1 // pred_check
      %p45 = pneg %p44
    $region23: #{generator_forward.2} parent=1 // pred_check_branch
      %47 = sbr.rel (%p45) target = $region25
    $region24: #{generator_forward.2} parent=1 // pred_region
      %vm48 = vcmask 7168
      %49 = vst.msk [vmem:[#allocation2] sm:$0xff] %vm48, -inf
      %50 = vst.msk [vmem:[#allocation2 + $0x8] sm:$0xff] %vm48, -inf
      %51 = vst.msk [vmem:[#allocation3] sm:$0xff] %vm48, 0.0
      %52 = vst.msk [vmem:[#allocation3 + $0x8] sm:$0xff] %vm48, 0.0
    $region25: #{generator_forward.2} parent=1 // pred_fallthru
      _
    %v53 = vld [vmem:[#allocation4] sm:$0xff]
    %v54 = vld [vmem:[#allocation4 + $0x8] sm:$0xff]
    %v55 = vld [vmem:[#allocation6] sm:$0xff]
    %v56 = vld [vmem:[#allocation6 + $0x8] sm:$0xff]
    %v57 = vld [vmem:[#allocation6 + $0x10] sm:$0xff]
    %v58 = vld [vmem:[#allocation6 + $0x18] sm:$0xff]
    %v59 = vld [vmem:[%s2] sm:$0x1]
    %v61 = vlaneseq
    %v62 = vshrl.u32 %v61, 7
    %v63 = vsub.s32 0, %v62
    %v64 = vrot.slane %v59, %v63
    %vm66 = vcmask 261120
    %v68 = vsel %vm66, %v53, 0
    %v71 = vsel %vm66, %v54, 0
    %73 = vmatprep.subr.mxu0 0.0
    %74 = vmatpush1.msra.mxu0 %v55
    %75 = vmatprep.subr.mxu0 0.0
    %76 = vmatpush1.msra.mxu0 %v56
    %77 = vmatprep.subr.mxu0 0.0
    %78 = vmatpush1.msra.mxu0 %v57
    %79 = vmatprep.subr.mxu0 0.0
    %80 = vmatpush1.msra.mxu0 %v58
    %81 = vmatprep.subr.mxu0 0.0
    %82 = vmatpush1.msra.mxu0 0.0
    %83 = vmatprep.subr.mxu0 0.0
    %84 = vmatpush1.msra.mxu0 0.0
    %85 = vmatprep.subr.mxu0 0.0
    %86 = vmatpush1.msra.mxu0 0.0
    %87 = vmatprep.subr.mxu0 0.0
    %88 = vmatpush1.msra.mxu0 0.0
    %89 = vmatprep.subr.mxu0 0.0
    %90 = vmatpush1.msra.mxu0 0.0
    %91 = vmatprep.subr.mxu0 0.0
    %92 = vmatpush1.msra.mxu0 0.0
    %93 = vmatprep.subr.mxu0 0.0
    %94 = vmatpush1.msra.mxu0 0.0
    %95 = vmatprep.subr.mxu0 0.0
    %96 = vmatpush1.msra.mxu0 0.0
    %97 = vmatprep.subr.mxu0 0.0
    %98 = vmatpush1.msra.mxu0 0.0
    %99 = vmatprep.subr.mxu0 0.0
    %100 = vmatpush1.msra.mxu0 0.0
    %101 = vmatprep.subr.mxu0 0.0
    %102 = vmatpush1.msra.mxu0 0.0
    %103 = vmatprep.subr.mxu0 0.0
    %104 = vmatpush1.msra.mxu0 0.0
    %105 = vmatprep.subr.mxu0 0.0
    %106 = vmatpush1.msra.mxu0 0.0
    %107 = vmatprep.subr.mxu0 0.0
    %108 = vmatpush1.msra.mxu0 0.0
    %109 = vmatprep.subr.mxu0 0.0
    %110 = vmatpush1.msra.mxu0 0.0
    %111 = vmatprep.subr.mxu0 0.0
    %112 = vmatpush1.msra.mxu0 0.0
    %113 = vmatprep.subr.mxu0 0.0
    %114 = vmatpush1.msra.mxu0 0.0
    %115 = vmatprep.subr.mxu0 0.0
    %116 = vmatpush1.msra.mxu0 0.0
    %117 = vmatprep.subr.mxu0 0.0
    %118 = vmatpush1.msra.mxu0 0.0
    %119 = vmatprep.subr.mxu0 0.0
    %120 = vmatpush1.msra.mxu0 0.0
    %121 = vmatprep.subr.mxu0 0.0
    %122 = vmatpush1.msra.mxu0 0.0
    %123 = vmatprep.subr.mxu0 0.0
    %124 = vmatpush1.msra.mxu0 0.0
    %125 = vmatprep.subr.mxu0 0.0
    %126 = vmatpush1.msra.mxu0 0.0
    %127 = vmatprep.subr.mxu0 0.0
    %128 = vmatpush1.msra.mxu0 0.0
    %129 = vmatprep.subr.mxu0 0.0
    %130 = vmatpush1.msra.mxu0 0.0
    %131 = vmatprep.subr.mxu0 0.0
    %132 = vmatpush1.msra.mxu0 0.0
    %133 = vmatprep.subr.mxu0 0.0
    %134 = vmatpush1.msra.mxu0 0.0
    %135 = vmatprep.subr.mxu0 0.0
    %136 = vmatpush1.msra.mxu0 0.0
    %137 = vmatprep.mubr.f32.mxu0 0.0
    %138 = vmatmul.mubr.f32.gmra.mrb[0].mxu0 %v68
    %v139 = vpop.f32.mrb[0].mxu0
    %v140 = vadd.f32 %v64, %v139
    %v141 = vpop.f32.mrb[0].mxu0
    %142 = vmatprep.mubr.f32.mxu0 0.0
    %143 = vmatmul.mubr.f32.gmra.mrb[0].mxu0 %v71
    %v144 = vpop.f32.mrb[0].mxu0
    %v145 = vadd.f32 %v64, %v144
    %v146 = vpop.f32.mrb[0].mxu0
    %147 = vdwg.mxu0
    %148 = vst [vmem:[%s3] sm:$0xff] %v140
    %149 = vst [vmem:[%s3 + $0x8] sm:$0xff] %v145
    %v150 = vld [vmem:[#allocation2] sm:$0xff]
    %v151 = vld [vmem:[#allocation2 + $0x8] sm:$0xff]
    %152 = vmax.xlane.f32.xlu0 %v140
    %v153 = vpop.xlane.xlu0 %152
    %154 = vmax.xlane.f32.xlu0 %v145
    %v155 = vpop.xlane.xlu0 %154
    %v156 = vmax.f32 %v150, %v153
    %v157 = vmax.f32 %v151, %v155
    %v158 = vld [vmem:[#allocation3] sm:$0xff]
    %v159 = vld [vmem:[#allocation3 + $0x8] sm:$0xff]
    %v160 = vsub.f32 %v150, %v156
    %v161 = vsub.f32 %v151, %v157
    %v162 = vmul.f32 %v160, 1.442695
    %v163 = vpow.pop %v162
    %v164 = vmul.f32 %v161, 1.442695
    %v165 = vpow.pop %v164
    %v166 = vmul.f32 %v158, %v163
    %v167 = vmul.f32 %v159, %v165
    %169 = vset.pattern.permute.xlu0 0
    %170 = vperm.xlu0 %169, %v156
    %v171 = vpop.permute.xlu0 %170
    %174 = vset.pattern.permute.xlu0 0
    %175 = vperm.xlu0 %174, %v157
    %v176 = vpop.permute.xlu0 %175
    %v178 = vsub.f32 %v140, %v171
    %v179 = vsub.f32 %v145, %v176
    %v180 = vmul.f32 %v178, 1.442695
    %v181 = vpow.pop %v180
    %v182 = vmul.f32 %v179, 1.442695
    %v183 = vpow.pop %v182
    %184 = vadd.xlane.f32.xlu0 %v181
    %v185 = vpop.xlane.xlu0 %184
    %186 = vadd.xlane.f32.xlu0 %v183
    %v187 = vpop.xlane.xlu0 %186
    %v188 = vadd.f32 %v166, %v185
    %v189 = vadd.f32 %v167, %v187
    %vm190 = vcmask 7168
    %191 = vst.msk [vmem:[#allocation3] sm:$0xff] %vm190, %v188
    %192 = vst.msk [vmem:[#allocation3 + $0x8] sm:$0xff] %vm190, %v189
    %193 = vst.msk [vmem:[#allocation2] sm:$0xff] %vm190, %v156
    %194 = vst.msk [vmem:[#allocation2 + $0x8] sm:$0xff] %vm190, %v157
    // Predicated region
    $region26: #{generator_forward.2} parent=1 // pred_check
      %p195 = pneg %p44
    $region27: #{generator_forward.2} parent=1 // pred_check_branch
      %197 = sbr.rel (%p195) target = $region29
    $region28: #{generator_forward.2} parent=1 // pred_region
      %v198 = vld [vmem:[#allocation2] sm:$0xff]
      %v199 = vld [vmem:[#allocation2 + $0x8] sm:$0xff]
      %v200 = vld [vmem:[#allocation3] sm:$0xff]
      %v201 = vld [vmem:[#allocation3 + $0x8] sm:$0xff]
      %v202 = vlog2.pop %v200
      %v203 = vmul.f32 %v202, 0.6931472
      %v204 = vlog2.pop %v201
      %v205 = vmul.f32 %v204, 0.6931472
      %v206 = vadd.f32 %v198, %v203
      %v207 = vadd.f32 %v199, %v205
      %208 = vst.msk [vmem:[%s4] sm:$0xff] %vm190, %v206
      %209 = vst.msk [vmem:[%s4 + $0x8] sm:$0xff] %vm190, %v207
    $region29: #{generator_forward.2} parent=1 // pred_fallthru
      _
    // Predicated region
    $region30: #{generator_forward.2} parent=1 // pred_check
      _
    $region31: #{generator_forward.2} parent=1 // pred_check_branch
      %211 = sbr.rel (0) target = $region33
    $region32: #{generator_forward.2} parent=1 // pred_region
      _
    $region33: #{generator_forward.2} parent=1 // pred_fallthru
      _
    // Predicated region
    $region34: #{generator_forward.2} parent=1 // pred_check
      _
    $region35: #{generator_forward.2} parent=1 // pred_check_branch
      %213 = sbr.rel (0) target = $region37
    $region36: #{generator_forward.2} parent=1 // pred_region
      _
    $region37: #{generator_forward.2} parent=1 // pred_fallthru
      _
    // Predicated region
    $region38: #{generator_forward.2} parent=1 // pred_check
      _
    $region39: #{generator_forward.2} parent=1 // pred_check_branch
      %215 = sbr.rel (0) target = $region41
    $region40: #{generator_forward.2} parent=1 // pred_region
      _
    $region41: #{generator_forward.2} parent=1 // pred_fallthru
      _
    // Predicated region
    $region42: #{generator_forward.2} parent=1 // pred_check
      _
    $region43: #{generator_forward.2} parent=1 // pred_check_branch
      %217 = sbr.rel (0) target = $region45
    $region44: #{generator_forward.2} parent=1 // pred_region
      _
    $region45: #{generator_forward.2} parent=1 // pred_fallthru
      _
    %218 = vsyncpa [#allocation5], 1
    %219 = vsyncpa [#allocation7], 1

</llo_original>
